<compile_context>
chip_gen: v7x
topology: tpu7x:2x2x1
jax: 0.10.0
libtpu: 0.0.40
codegen_flags: <defaults>
</compile_context>

<pallas_src>
import math
import jax
import jax.numpy as jnp
from jax.experimental import pallas as pl
from jax.experimental.pallas import tpu as pltpu

# ---------------- module configuration (small, consistent with the module) ---
B, CIN, H, W = 2, 4, 16, 16
COUT = 8
KSIZE, STRIDE, PAD, DIL, GROUPS = 3, 1, 1, 1, 1
KN = 2                                   # kernel_num
REDUCTION, MIN_CH = 0.0625, 16
A = max(int(CIN * REDUCTION), MIN_CH)    # attention_channel = 16
K2 = KSIZE * KSIZE                       # 9 kernel taps
KCIN = K2 * CIN                          # 36 fused contraction depth
HW = H * W                               # 256 (lane-dense)
NATT = CIN + COUT + K2 + KN              # 23 stacked attention rows
CENTER_ROW = (K2 // 2) * CIN             # xcol rows that hold un-shifted x (pad == (k-1)//2)
TEMP = 1.0                               # self.temperature (folded host-side)
BN_EPS = 1e-5


def _sigmoid(v):
    # exp (EUP) + pl.reciprocal; matches torch.sigmoid to fp32 rounding here.
    return pl.reciprocal(1.0 + jnp.exp(-v), approx=False)


# ---------------- Pallas kernel: whole batch in one invocation ----------------
def odconv2d_kernel(xcol_ref, wfc_ref, bns_ref, bnb_ref, watt_ref, batt_ref,
                    w_ref, esp_ref, ech_ref, o_ref):
    # xcol_ref : (B, K2*CIN, HW)    fused tap-major im2col (row index = tap*CIN + cin)
    # wfc_ref  : (A, CIN)           attention fc weight (native PyTorch layout)
    # bns_ref  : (A, 1)             folded inference-BN scale
    # bnb_ref  : (A, 1)             folded inference-BN shift
    # watt_ref : (NATT, A)          stacked [channel; filter; spatial; kernel] fc weights (1/T folded)
    # batt_ref : (NATT, 1)          stacked biases (1/T folded)
    # w_ref    : (KN, COUT, K2*CIN) conv weight bank, fused tap-major columns
    # esp_ref  : (K2*CIN, K2)       0/1 expansion: spatial attention -> per-row scale
    # ech_ref  : (K2*CIN, CIN)      0/1 expansion: channel attention -> per-row scale
    # o_ref    : (B, COUT, HW)      output

    # ---- attention head, batched over all B (feature-major columns) ---------
    # AdaptiveAvgPool2d(1): the centre-tap rows of xcol are exactly x (raw, unscaled).
    gap = jnp.concatenate(
        [jnp.mean(xcol_ref[b, CENTER_ROW:CENTER_ROW + CIN, :], axis=-1,
                  keepdims=True) for b in range(B)], axis=1)              # (CIN, B)
    a = jnp.dot(wfc_ref[...], gap, preferred_element_type=jnp.float32)   # (A, B)
    a = jnp.maximum(a * bns_ref[...] + bnb_ref[...], 0.0)                # BN + ReLU
    z = (jnp.dot(watt_ref[...], a, preferred_element_type=jnp.float32)
         + batt_ref[...])                                                # (NATT, B)

    ch = _sigmoid(z[:CIN])                           # (CIN, B)  channel attention
    fil = _sigmoid(z[CIN:CIN + COUT])                # (COUT, B) filter attention
    sp = _sigmoid(z[CIN + COUT:CIN + COUT + K2])     # (K2, B)   spatial attention
    kl = z[CIN + COUT + K2:]                         # (KN, B)   kernel logits
    kl = kl - jnp.max(kl, axis=0, keepdims=True)
    ke = jnp.exp(kl)
    kn = ke * pl.reciprocal(jnp.sum(ke, axis=0, keepdims=True), approx=False)  # (KN, B)

    # combined per-(tap,cin) scale: scale[t*CIN+c, b] = sp[t, b] * ch[c, b]
    scale = (jnp.dot(esp_ref[...], sp, preferred_element_type=jnp.float32)
             * jnp.dot(ech_ref[...], ch, preferred_element_type=jnp.float32))  # (K2*CIN, B)

    w_bank = w_ref[...]                              # (KN, COUT, K2*CIN)

    # ---- dynamic conv: ONE fused (COUT,K2*CIN)@(K2*CIN,HW) matmul per batch --
    for b in range(B):                               # static loop, B = 2
        aggw = kn[0:1, b:b + 1] * w_bank[0]          # kernel-attention mix, whole bank
        for n in range(1, KN):
            aggw = aggw + kn[n:n + 1, b:b + 1] * w_bank[n]
        aggw = aggw * fil[:, b:b + 1]                # filter attention folded into weight rows
        xs = xcol_ref[b] * scale[:, b:b + 1]         # channel*spatial attention, one column bcast
        o_ref[b] = jnp.dot(aggw, xs, preferred_element_type=jnp.float32)  # lane-dense (COUT, HW)


# ---------------- host-side layout prep + pallas_call wrapper ----------------
def _im2col_fused(x):
    """(B, Cin, H, W) -> (B, k*k*Cin, H*W) fused tap-major im2col (stride 1, 'same')."""
    xp = jnp.pad(x, ((0, 0), (0, 0), (PAD, PAD), (PAD, PAD)))
    taps = [xp[:, :, ky:ky + H, kx:kx + W].reshape(B, CIN, HW)
            for ky in range(KSIZE) for kx in range(KSIZE)]
    return jnp.concatenate(taps, axis=1)             # row index = tap*CIN + cin


@jax.jit
def odconv2d(x, params):
    (w_main, w_fc, bn_gamma, bn_beta, bn_mean, bn_var,
     w_ch, b_ch, w_fil, b_fil, w_sp, b_sp, w_kn, b_kn) = params

    # exact parameter folding + layout plumbing only (no conv/attention compute here)
    xcol = _im2col_fused(x)                                              # (B, K2*CIN, HW)
    # weight bank columns match the xcol row order: index = tap*CIN + cin
    w_bank = jnp.transpose(w_main, (0, 1, 3, 4, 2)).reshape(KN, COUT, KCIN)
    inv_std = 1.0 / jnp.sqrt(bn_var + BN_EPS)
    # TODO(synk): BN is folded in inference mode (running stats); training-mode
    # batch statistics are not modeled.
    bn_scale = (bn_gamma * inv_std).reshape(A, 1)
    bn_shift = (bn_beta - bn_mean * bn_gamma * inv_std).reshape(A, 1)
    inv_t = 1.0 / TEMP                                                   # temperature folded host-side
    w_att = jnp.concatenate([w_ch, w_fil, w_sp, w_kn], axis=0) * inv_t   # (NATT, A)
    b_att = (jnp.concatenate([b_ch, b_fil, b_sp, b_kn], axis=0) * inv_t).reshape(NATT, 1)
    e_sp = jnp.repeat(jnp.eye(K2, dtype=jnp.float32), CIN, axis=0)       # (K2*CIN, K2)
    e_ch = jnp.tile(jnp.eye(CIN, dtype=jnp.float32), (K2, 1))            # (K2*CIN, CIN)

    out_flat = pl.pallas_call(
        odconv2d_kernel,
        out_shape=jax.ShapeDtypeStruct((B, COUT, HW), jnp.float32),
        grid=(1,),
        in_specs=[
            pl.BlockSpec((B, KCIN, HW), lambda i: (0, 0, 0)),            # fused im2col
            pl.BlockSpec((A, CIN), lambda i: (0, 0)),                    # fc weight
            pl.BlockSpec((A, 1), lambda i: (0, 0)),                      # BN scale
            pl.BlockSpec((A, 1), lambda i: (0, 0)),                      # BN shift
            pl.BlockSpec((NATT, A), lambda i: (0, 0)),                   # stacked attn weights
            pl.BlockSpec((NATT, 1), lambda i: (0, 0)),                   # stacked attn biases
            pl.BlockSpec((KN, COUT, KCIN), lambda i: (0, 0, 0)),         # fused conv weight bank
            pl.BlockSpec((KCIN, K2), lambda i: (0, 0)),                  # spatial-attn expansion
            pl.BlockSpec((KCIN, CIN), lambda i: (0, 0)),                 # channel-attn expansion
        ],
        out_specs=pl.BlockSpec((B, COUT, HW), lambda i: (0, 0, 0)),
        compiler_params=pltpu.CompilerParams(
            dimension_semantics=("arbitrary",)),
    )(xcol, w_fc, bn_scale, bn_shift, w_att, b_att, w_bank, e_sp, e_ch)
    return out_flat.reshape(B, COUT, H, W)


# ---------------- pure-JAX reference (mirrors the PyTorch forward) ------------
def reference(x, params):
    (w_main, w_fc, bn_gamma, bn_beta, bn_mean, bn_var,
     w_ch, b_ch, w_fil, b_fil, w_sp, b_sp, w_kn, b_kn) = params
    hi = jax.lax.Precision.HIGHEST
    mm = lambda a, b: jnp.matmul(a, b, precision=hi)

    # ODConv_Attention.forward
    gap = jnp.mean(x, axis=(2, 3))                                       # AdaptiveAvgPool2d(1)
    a = mm(gap, w_fc.T)                                                  # fc (1x1 conv, no bias)
    a = (a - bn_mean) / jnp.sqrt(bn_var + BN_EPS) * bn_gamma + bn_beta   # BN (B != 1, inference)
    a = jnp.maximum(a, 0.0)                                              # ReLU
    ch = jax.nn.sigmoid((mm(a, w_ch.T) + b_ch) / TEMP)                   # (B, Cin)
    fil = jax.nn.sigmoid((mm(a, w_fil.T) + b_fil) / TEMP)                # (B, Cout)
    sp = jax.nn.sigmoid((mm(a, w_sp.T) + b_sp) / TEMP).reshape(B, 1, 1, 1, KSIZE, KSIZE)
    kn = jax.nn.softmax((mm(a, w_kn.T) + b_kn) / TEMP, axis=1).reshape(B, KN, 1, 1, 1, 1)

    # ODConv2d._forward_impl_common
    xs = x * ch[:, :, None, None]
    aggw = jnp.sum(sp * kn * w_main[None], axis=1)                       # (B, Cout, Cin, k, k)

    def conv1(xb, wb):   # grouped conv with groups = B  ==  per-batch conv
        return jax.lax.conv_general_dilated(
            xb[None], wb, window_strides=(STRIDE, STRIDE),
            padding=((PAD, PAD), (PAD, PAD)), rhs_dilation=(DIL, DIL),
            dimension_numbers=("NCHW", "OIHW", "NCHW"),
            feature_group_count=GROUPS, precision=hi)[0]

    out = jax.vmap(conv1)(xs, aggw)                                      # (B, Cout, H, W)
    return out * fil[:, :, None, None]


# ---------------- deterministic parameter construction -----------------------
def make_params(key):
    # PyTorch inits conv biases to 0 and BN to identity; random values are used
    # here so the BN folding and every bias path are actually exercised.
    ks = jax.random.split(key, 14)
    kai = lambda k, shape, fan_out: (jax.random.normal(k, shape, jnp.float32)
                                     * math.sqrt(2.0 / fan_out))
    w_main = kai(ks[0], (KN, COUT, CIN // GROUPS, KSIZE, KSIZE), COUT * KSIZE * KSIZE)
    w_fc = kai(ks[1], (A, CIN), A)              # 1x1 conv weights, trailing (1,1) dims dropped
    bn_gamma = 1.0 + 0.1 * jax.random.normal(ks[2], (A,), jnp.float32)
    bn_beta = 0.1 * jax.random.normal(ks[3], (A,), jnp.float32)
    bn_mean = 0.1 * jax.random.normal(ks[4], (A,), jnp.float32)
    bn_var = jax.random.uniform(ks[5], (A,), jnp.float32, 0.5, 1.5)
    w_ch = kai(ks[6], (CIN, A), CIN)
    b_ch = 0.1 * jax.random.normal(ks[7], (CIN,), jnp.float32)
    w_fil = kai(ks[8], (COUT, A), COUT)
    b_fil = 0.1 * jax.random.normal(ks[9], (COUT,), jnp.float32)
    w_sp = kai(ks[10], (K2, A), K2)
    b_sp = 0.1 * jax.random.normal(ks[11], (K2,), jnp.float32)
    w_kn = kai(ks[12], (KN, A), KN)
    b_kn = 0.1 * jax.random.normal(ks[13], (KN,), jnp.float32)
    return (w_main, w_fc, bn_gamma, bn_beta, bn_mean, bn_var,
            w_ch, b_ch, w_fil, b_fil, w_sp, b_sp, w_kn, b_kn)


if __name__ == "__main__":
    key = jax.random.PRNGKey(0)
    kx, kp = jax.random.split(key)
    x = jax.random.normal(kx, (B, CIN, H, W), jnp.float32)
    params = make_params(kp)

    out = odconv2d(x, params)
    out = jax.block_until_ready(out)

    ref = reference(x, params)
    assert out.shape == (B, COUT, H, W)
    max_err = float(jnp.max(jnp.abs(out - ref)))
    assert jnp.allclose(out, ref, atol=5e-4, rtol=5e-4), \
        f"mismatch vs reference (max abs err {max_err})"
    print("KERNEL_OK")
</pallas_src>

<mosaic_0001>
module attributes {stable_mosaic.version = 11 : i64} {
  func.func @odconv2d_kernel(%arg0: i32, %arg1: memref<2x36x256xf32, #tpu.memory_space<vmem>>, %arg2: memref<16x4xf32, #tpu.memory_space<vmem>>, %arg3: memref<16x1xf32, #tpu.memory_space<vmem>>, %arg4: memref<16x1xf32, #tpu.memory_space<vmem>>, %arg5: memref<23x16xf32, #tpu.memory_space<vmem>>, %arg6: memref<23x1xf32, #tpu.memory_space<vmem>>, %arg7: memref<2x8x36xf32, #tpu.memory_space<vmem>>, %arg8: memref<36x9xf32, #tpu.memory_space<vmem>>, %arg9: memref<36x4xf32, #tpu.memory_space<vmem>>, %arg10: memref<2x8x256xf32, #tpu.memory_space<vmem>>) attributes {dimension_semantics = [#tpu.dimension_semantics<arbitrary>], iteration_bounds = array<i64: 1>, scalar_prefetch = 0 : i64, scratch_operands = 0 : i64, tpu.core_type = #tpu.core_type<tc>, window_params = [{pipeline_mode = #tpu.pipeline_mode<synchronous>, transform_indices = @transform_0, window_bounds = array<i64: 2, 36, 256>}, {pipeline_mode = #tpu.pipeline_mode<synchronous>, transform_indices = @transform_1, window_bounds = array<i64: 16, 4>}, {pipeline_mode = #tpu.pipeline_mode<synchronous>, transform_indices = @transform_2, window_bounds = array<i64: 16, 1>}, {pipeline_mode = #tpu.pipeline_mode<synchronous>, transform_indices = @transform_3, window_bounds = array<i64: 16, 1>}, {pipeline_mode = #tpu.pipeline_mode<synchronous>, transform_indices = @transform_4, window_bounds = array<i64: 23, 16>}, {pipeline_mode = #tpu.pipeline_mode<synchronous>, transform_indices = @transform_5, window_bounds = array<i64: 23, 1>}, {pipeline_mode = #tpu.pipeline_mode<synchronous>, transform_indices = @transform_6, window_bounds = array<i64: 2, 8, 36>}, {pipeline_mode = #tpu.pipeline_mode<synchronous>, transform_indices = @transform_7, window_bounds = array<i64: 36, 9>}, {pipeline_mode = #tpu.pipeline_mode<synchronous>, transform_indices = @transform_8, window_bounds = array<i64: 36, 4>}, {pipeline_mode = #tpu.pipeline_mode<synchronous>, transform_indices = @transform_9, window_bounds = array<i64: 2, 8, 256>}]} {
    %c0 = arith.constant 0 : index
    %c16 = arith.constant 16 : index
    %c0_0 = arith.constant 0 : index
    %0 = vector.load %arg1[%c0, %c16, %c0_0] : memref<2x36x256xf32, #tpu.memory_space<vmem>>, vector<1x4x256xf32>
    %1 = vector.shape_cast %0 : vector<1x4x256xf32> to vector<4x256xf32>
    %cst = arith.constant dense<0.000000e+00> : vector<4xf32>
    %2 = vector.multi_reduction <add>, %1, %cst [1] : vector<4x256xf32> to vector<4xf32>
    %3 = vector.shape_cast %2 : vector<4xf32> to vector<4x1xf32>
    %cst_1 = arith.constant 2.560000e+02 : f32
    %4 = vector.broadcast %cst_1 : f32 to vector<4x1xf32>
    %5 = arith.divf %3, %4 : vector<4x1xf32>
    %c1 = arith.constant 1 : index
    %c16_2 = arith.constant 16 : index
    %c0_3 = arith.constant 0 : index
    %6 = vector.load %arg1[%c1, %c16_2, %c0_3] : memref<2x36x256xf32, #tpu.memory_space<vmem>>, vector<1x4x256xf32>
    %7 = vector.shape_cast %6 : vector<1x4x256xf32> to vector<4x256xf32>
    %cst_4 = arith.constant dense<0.000000e+00> : vector<4xf32>
    %8 = vector.multi_reduction <add>, %7, %cst_4 [1] : vector<4x256xf32> to vector<4xf32>
    %9 = vector.shape_cast %8 : vector<4xf32> to vector<4x1xf32>
    %cst_5 = arith.constant 2.560000e+02 : f32
    %10 = vector.broadcast %cst_5 : f32 to vector<4x1xf32>
    %11 = arith.divf %9, %10 : vector<4x1xf32>
    %12 = tpu.concatenate %5, %11 in 1 : vector<4x1xf32>, vector<4x1xf32> -> vector<4x2xf32>
    %c0_6 = arith.constant 0 : index
    %c0_7 = arith.constant 0 : index
    %13 = vector.load %arg2[%c0_6, %c0_7] : memref<16x4xf32, #tpu.memory_space<vmem>>, vector<16x4xf32>
    %cst_8 = arith.constant dense<0.000000e+00> : vector<16x2xf32>
    %14 = tpu.matmul %13, %12, %cst_8 {dimension_numbers = #tpu.dot_dimension_numbers<[1], [0], [0], [1], [0, 0, 1, 1], [], []>} : vector<16x4xf32>, vector<4x2xf32>, vector<16x2xf32> -> vector<16x2xf32>
    %c0_9 = arith.constant 0 : index
    %c0_10 = arith.constant 0 : index
    %15 = vector.load %arg3[%c0_9, %c0_10] : memref<16x1xf32, #tpu.memory_space<vmem>>, vector<16x1xf32>
    %16 = vector.broadcast %15 : vector<16x1xf32> to vector<16x2xf32>
    %17 = arith.mulf %14, %16 : vector<16x2xf32>
    %c0_11 = arith.constant 0 : index
    %c0_12 = arith.constant 0 : index
    %18 = vector.load %arg4[%c0_11, %c0_12] : memref<16x1xf32, #tpu.memory_space<vmem>>, vector<16x1xf32>
    %19 = vector.broadcast %18 : vector<16x1xf32> to vector<16x2xf32>
    %20 = arith.addf %17, %19 : vector<16x2xf32>
    %cst_13 = arith.constant 0.000000e+00 : f32
    %21 = vector.broadcast %cst_13 : f32 to vector<16x2xf32>
    %22 = arith.maximumf %20, %21 : vector<16x2xf32>
    %c0_14 = arith.constant 0 : index
    %c0_15 = arith.constant 0 : index
    %23 = vector.load %arg5[%c0_14, %c0_15] : memref<23x16xf32, #tpu.memory_space<vmem>>, vector<23x16xf32>
    %cst_16 = arith.constant dense<0.000000e+00> : vector<23x2xf32>
    %24 = tpu.matmul %23, %22, %cst_16 {dimension_numbers = #tpu.dot_dimension_numbers<[1], [0], [0], [1], [0, 0, 1, 1], [], []>} : vector<23x16xf32>, vector<16x2xf32>, vector<23x2xf32> -> vector<23x2xf32>
    %c0_17 = arith.constant 0 : index
    %c0_18 = arith.constant 0 : index
    %25 = vector.load %arg6[%c0_17, %c0_18] : memref<23x1xf32, #tpu.memory_space<vmem>>, vector<23x1xf32>
    %26 = vector.broadcast %25 : vector<23x1xf32> to vector<23x2xf32>
    %27 = arith.addf %24, %26 : vector<23x2xf32>
    %28 = vector.extract_strided_slice %27 {offsets = [0, 0], sizes = [4, 2], strides = [1, 1]} : vector<23x2xf32> to vector<4x2xf32>
    %cst_19 = arith.constant 0.000000e+00 : f32
    %29 = vector.broadcast %cst_19 : f32 to vector<4x2xf32>
    %30 = arith.subf %29, %28 : vector<4x2xf32>
    %31 = math.exp %30 : vector<4x2xf32>
    %cst_20 = arith.constant 1.000000e+00 : f32
    %32 = vector.broadcast %cst_20 : f32 to vector<4x2xf32>
    %33 = arith.addf %32, %31 : vector<4x2xf32>
    %34 = tpu.reciprocal %33 : vector<4x2xf32> -> vector<4x2xf32>
    %35 = vector.extract_strided_slice %27 {offsets = [4, 0], sizes = [8, 2], strides = [1, 1]} : vector<23x2xf32> to vector<8x2xf32>
    %cst_21 = arith.constant 0.000000e+00 : f32
    %36 = vector.broadcast %cst_21 : f32 to vector<8x2xf32>
    %37 = arith.subf %36, %35 : vector<8x2xf32>
    %38 = math.exp %37 : vector<8x2xf32>
    %cst_22 = arith.constant 1.000000e+00 : f32
    %39 = vector.broadcast %cst_22 : f32 to vector<8x2xf32>
    %40 = arith.addf %39, %38 : vector<8x2xf32>
    %41 = tpu.reciprocal %40 : vector<8x2xf32> -> vector<8x2xf32>
    %42 = vector.extract_strided_slice %27 {offsets = [12, 0], sizes = [9, 2], strides = [1, 1]} : vector<23x2xf32> to vector<9x2xf32>
    %cst_23 = arith.constant 0.000000e+00 : f32
    %43 = vector.broadcast %cst_23 : f32 to vector<9x2xf32>
    %44 = arith.subf %43, %42 : vector<9x2xf32>
    %45 = math.exp %44 : vector<9x2xf32>
    %cst_24 = arith.constant 1.000000e+00 : f32
    %46 = vector.broadcast %cst_24 : f32 to vector<9x2xf32>
    %47 = arith.addf %46, %45 : vector<9x2xf32>
    %48 = tpu.reciprocal %47 : vector<9x2xf32> -> vector<9x2xf32>
    %49 = vector.extract_strided_slice %27 {offsets = [21, 0], sizes = [2, 2], strides = [1, 1]} : vector<23x2xf32> to vector<2x2xf32>
    %cst_25 = arith.constant dense<0xFF800000> : vector<2xf32>
    %50 = vector.multi_reduction <maximumf>, %49, %cst_25 [0] : vector<2x2xf32> to vector<2xf32>
    %51 = vector.shape_cast %50 : vector<2xf32> to vector<1x2xf32>
    %52 = vector.broadcast %51 : vector<1x2xf32> to vector<2x2xf32>
    %53 = arith.subf %49, %52 : vector<2x2xf32>
    %54 = math.exp %53 : vector<2x2xf32>
    %cst_26 = arith.constant dense<0.000000e+00> : vector<2xf32>
    %55 = vector.multi_reduction <add>, %54, %cst_26 [0] : vector<2x2xf32> to vector<2xf32>
    %56 = vector.shape_cast %55 : vector<2xf32> to vector<1x2xf32>
    %57 = tpu.reciprocal %56 : vector<1x2xf32> -> vector<1x2xf32>
    %58 = vector.broadcast %57 : vector<1x2xf32> to vector<2x2xf32>
    %59 = arith.mulf %54, %58 : vector<2x2xf32>
    %c0_27 = arith.constant 0 : index
    %c0_28 = arith.constant 0 : index
    %60 = vector.load %arg8[%c0_27, %c0_28] : memref<36x9xf32, #tpu.memory_space<vmem>>, vector<36x9xf32>
    %cst_29 = arith.constant dense<0.000000e+00> : vector<36x2xf32>
    %61 = tpu.matmul %60, %48, %cst_29 {dimension_numbers = #tpu.dot_dimension_numbers<[1], [0], [0], [1], [0, 0, 1, 1], [], []>} : vector<36x9xf32>, vector<9x2xf32>, vector<36x2xf32> -> vector<36x2xf32>
    %c0_30 = arith.constant 0 : index
    %c0_31 = arith.constant 0 : index
    %62 = vector.load %arg9[%c0_30, %c0_31] : memref<36x4xf32, #tpu.memory_space<vmem>>, vector<36x4xf32>
    %cst_32 = arith.constant dense<0.000000e+00> : vector<36x2xf32>
    %63 = tpu.matmul %62, %34, %cst_32 {dimension_numbers = #tpu.dot_dimension_numbers<[1], [0], [0], [1], [0, 0, 1, 1], [], []>} : vector<36x4xf32>, vector<4x2xf32>, vector<36x2xf32> -> vector<36x2xf32>
    %64 = arith.mulf %61, %63 : vector<36x2xf32>
    %c0_33 = arith.constant 0 : index
    %c0_34 = arith.constant 0 : index
    %c0_35 = arith.constant 0 : index
    %65 = vector.load %arg7[%c0_33, %c0_34, %c0_35] : memref<2x8x36xf32, #tpu.memory_space<vmem>>, vector<2x8x36xf32>
    %66 = vector.extract_strided_slice %59 {offsets = [0, 0], sizes = [1, 1], strides = [1, 1]} : vector<2x2xf32> to vector<1x1xf32>
    %67 = vector.extract_strided_slice %65 {offsets = [0, 0, 0], sizes = [1, 8, 36], strides = [1, 1, 1]} : vector<2x8x36xf32> to vector<1x8x36xf32>
    %68 = vector.shape_cast %67 : vector<1x8x36xf32> to vector<8x36xf32>
    %69 = vector.broadcast %66 : vector<1x1xf32> to vector<8x36xf32>
    %70 = arith.mulf %69, %68 : vector<8x36xf32>
    %71 = vector.extract_strided_slice %59 {offsets = [1, 0], sizes = [1, 1], strides = [1, 1]} : vector<2x2xf32> to vector<1x1xf32>
    %72 = vector.extract_strided_slice %65 {offsets = [1, 0, 0], sizes = [1, 8, 36], strides = [1, 1, 1]} : vector<2x8x36xf32> to vector<1x8x36xf32>
    %73 = vector.shape_cast %72 : vector<1x8x36xf32> to vector<8x36xf32>
    %74 = vector.broadcast %71 : vector<1x1xf32> to vector<8x36xf32>
    %75 = arith.mulf %74, %73 : vector<8x36xf32>
    %76 = arith.addf %70, %75 : vector<8x36xf32>
    %77 = vector.extract_strided_slice %41 {offsets = [0, 0], sizes = [8, 1], strides = [1, 1]} : vector<8x2xf32> to vector<8x1xf32>
    %78 = vector.broadcast %77 : vector<8x1xf32> to vector<8x36xf32>
    %79 = arith.mulf %76, %78 : vector<8x36xf32>
    %c0_36 = arith.constant 0 : index
    %c0_37 = arith.constant 0 : index
    %c0_38 = arith.constant 0 : index
    %80 = vector.load %arg1[%c0_36, %c0_37, %c0_38] : memref<2x36x256xf32, #tpu.memory_space<vmem>>, vector<1x36x256xf32>
    %81 = vector.shape_cast %80 : vector<1x36x256xf32> to vector<36x256xf32>
    %82 = vector.extract_strided_slice %64 {offsets = [0, 0], sizes = [36, 1], strides = [1, 1]} : vector<36x2xf32> to vector<36x1xf32>
    %83 = vector.broadcast %82 : vector<36x1xf32> to vector<36x256xf32>
    %84 = arith.mulf %81, %83 : vector<36x256xf32>
    %cst_39 = arith.constant dense<0.000000e+00> : vector<8x256xf32>
    %85 = tpu.matmul %79, %84, %cst_39 {dimension_numbers = #tpu.dot_dimension_numbers<[1], [0], [0], [1], [0, 0, 1, 1], [], []>} : vector<8x36xf32>, vector<36x256xf32>, vector<8x256xf32> -> vector<8x256xf32>
    %c0_40 = arith.constant 0 : index
    %c0_41 = arith.constant 0 : index
    %c0_42 = arith.constant 0 : index
    %86 = vector.load %arg10[%c0_40, %c0_41, %c0_42] : memref<2x8x256xf32, #tpu.memory_space<vmem>>, vector<1x8x256xf32>
    %87 = vector.shape_cast %86 : vector<1x8x256xf32> to vector<8x256xf32>
    %88 = vector.shape_cast %85 : vector<8x256xf32> to vector<1x8x256xf32>
    tpu.vector_store %arg10[%c0_40, %c0_41, %c0_42], %88 {strides = array<i32>} : memref<2x8x256xf32, #tpu.memory_space<vmem>>, vector<1x8x256xf32>,
    %89 = vector.extract_strided_slice %59 {offsets = [0, 1], sizes = [1, 1], strides = [1, 1]} : vector<2x2xf32> to vector<1x1xf32>
    %90 = vector.extract_strided_slice %65 {offsets = [0, 0, 0], sizes = [1, 8, 36], strides = [1, 1, 1]} : vector<2x8x36xf32> to vector<1x8x36xf32>
    %91 = vector.shape_cast %90 : vector<1x8x36xf32> to vector<8x36xf32>
    %92 = vector.broadcast %89 : vector<1x1xf32> to vector<8x36xf32>
    %93 = arith.mulf %92, %91 : vector<8x36xf32>
    %94 = vector.extract_strided_slice %59 {offsets = [1, 1], sizes = [1, 1], strides = [1, 1]} : vector<2x2xf32> to vector<1x1xf32>
    %95 = vector.extract_strided_slice %65 {offsets = [1, 0, 0], sizes = [1, 8, 36], strides = [1, 1, 1]} : vector<2x8x36xf32> to vector<1x8x36xf32>
    %96 = vector.shape_cast %95 : vector<1x8x36xf32> to vector<8x36xf32>
    %97 = vector.broadcast %94 : vector<1x1xf32> to vector<8x36xf32>
    %98 = arith.mulf %97, %96 : vector<8x36xf32>
    %99 = arith.addf %93, %98 : vector<8x36xf32>
    %100 = vector.extract_strided_slice %41 {offsets = [0, 1], sizes = [8, 1], strides = [1, 1]} : vector<8x2xf32> to vector<8x1xf32>
    %101 = vector.broadcast %100 : vector<8x1xf32> to vector<8x36xf32>
    %102 = arith.mulf %99, %101 : vector<8x36xf32>
    %c1_43 = arith.constant 1 : index
    %c0_44 = arith.constant 0 : index
    %c0_45 = arith.constant 0 : index
    %103 = vector.load %arg1[%c1_43, %c0_44, %c0_45] : memref<2x36x256xf32, #tpu.memory_space<vmem>>, vector<1x36x256xf32>
    %104 = vector.shape_cast %103 : vector<1x36x256xf32> to vector<36x256xf32>
    %105 = vector.extract_strided_slice %64 {offsets = [0, 1], sizes = [36, 1], strides = [1, 1]} : vector<36x2xf32> to vector<36x1xf32>
    %106 = vector.broadcast %105 : vector<36x1xf32> to vector<36x256xf32>
    %107 = arith.mulf %104, %106 : vector<36x256xf32>
    %cst_46 = arith.constant dense<0.000000e+00> : vector<8x256xf32>
    %108 = tpu.matmul %102, %107, %cst_46 {dimension_numbers = #tpu.dot_dimension_numbers<[1], [0], [0], [1], [0, 0, 1, 1], [], []>} : vector<8x36xf32>, vector<36x256xf32>, vector<8x256xf32> -> vector<8x256xf32>
    %c1_47 = arith.constant 1 : index
    %c0_48 = arith.constant 0 : index
    %c0_49 = arith.constant 0 : index
    %109 = vector.load %arg10[%c1_47, %c0_48, %c0_49] : memref<2x8x256xf32, #tpu.memory_space<vmem>>, vector<1x8x256xf32>
    %110 = vector.shape_cast %109 : vector<1x8x256xf32> to vector<8x256xf32>
    %111 = vector.shape_cast %108 : vector<8x256xf32> to vector<1x8x256xf32>
    tpu.vector_store %arg10[%c1_47, %c0_48, %c0_49], %111 {strides = array<i32>} : memref<2x8x256xf32, #tpu.memory_space<vmem>>, vector<1x8x256xf32>,
    return
  }
  func.func @transform_0(%arg0: i32) -> (i32, i32, i32) {
    %c0_i32 = arith.constant 0 : i32
    %c0_i32_0 = arith.constant 0 : i32
    %c0_i32_1 = arith.constant 0 : i32
    %c0_i32_2 = arith.constant 0 : i32
    return %c0_i32, %c0_i32_0, %c0_i32_1 : i32, i32, i32
  }
  func.func @transform_1(%arg0: i32) -> (i32, i32) {
    %c0_i32 = arith.constant 0 : i32
    %c0_i32_0 = arith.constant 0 : i32
    %c0_i32_1 = arith.constant 0 : i32
    return %c0_i32, %c0_i32_0 : i32, i32
  }
  func.func @transform_2(%arg0: i32) -> (i32, i32) {
    %c0_i32 = arith.constant 0 : i32
    %c0_i32_0 = arith.constant 0 : i32
    %c0_i32_1 = arith.constant 0 : i32
    return %c0_i32, %c0_i32_0 : i32, i32
  }
  func.func @transform_3(%arg0: i32) -> (i32, i32) {
    %c0_i32 = arith.constant 0 : i32
    %c0_i32_0 = arith.constant 0 : i32
    %c0_i32_1 = arith.constant 0 : i32
    return %c0_i32, %c0_i32_0 : i32, i32
  }
  func.func @transform_4(%arg0: i32) -> (i32, i32) {
    %c0_i32 = arith.constant 0 : i32
    %c0_i32_0 = arith.constant 0 : i32
    %c0_i32_1 = arith.constant 0 : i32
    return %c0_i32, %c0_i32_0 : i32, i32
  }
  func.func @transform_5(%arg0: i32) -> (i32, i32) {
    %c0_i32 = arith.constant 0 : i32
    %c0_i32_0 = arith.constant 0 : i32
    %c0_i32_1 = arith.constant 0 : i32
    return %c0_i32, %c0_i32_0 : i32, i32
  }
  func.func @transform_6(%arg0: i32) -> (i32, i32, i32) {
    %c0_i32 = arith.constant 0 : i32
    %c0_i32_0 = arith.constant 0 : i32
    %c0_i32_1 = arith.constant 0 : i32
    %c0_i32_2 = arith.constant 0 : i32
    return %c0_i32, %c0_i32_0, %c0_i32_1 : i32, i32, i32
  }
  func.func @transform_7(%arg0: i32) -> (i32, i32) {
    %c0_i32 = arith.constant 0 : i32
    %c0_i32_0 = arith.constant 0 : i32
    %c0_i32_1 = arith.constant 0 : i32
    return %c0_i32, %c0_i32_0 : i32, i32
  }
  func.func @transform_8(%arg0: i32) -> (i32, i32) {
    %c0_i32 = arith.constant 0 : i32
    %c0_i32_0 = arith.constant 0 : i32
    %c0_i32_1 = arith.constant 0 : i32
    return %c0_i32, %c0_i32_0 : i32, i32
  }
  func.func @transform_9(%arg0: i32) -> (i32, i32, i32) {
    %c0_i32 = arith.constant 0 : i32
    %c0_i32_0 = arith.constant 0 : i32
    %c0_i32_1 = arith.constant 0 : i32
    %c0_i32_2 = arith.constant 0 : i32
    return %c0_i32, %c0_i32_0, %c0_i32_1 : i32, i32, i32
  }
}

</mosaic_0001>

<llo_original>
// kernel: tile.9
$region0: #{tile.9}
  %s0 = inlined_call_operand.vmem [shape: f32[9,4,4], index: 0, kind: input, shape index: {}]
  %s1 = inlined_call_operand.vmem [shape: f32[36,4], index: 1, kind: output, shape index: {}]
  $region1: #{tile.9} parent=0
    #allocation0 [shape = 'u8[4096]{0}', space=vmem, size = 0x1000, scoped, tag = 'scoped mem for output reshape']
    %s2 = smov 3
    %v3 = vld [vmem:[%s0] ss:$16 sm:%s2]
    %s4 = smov 12
    %v5 = vld [vmem:[%s0] ss:$16 sm:%s4]
    %vm6 = vcmask 1043458
    %v7 = vsel %vm6, %v5, %v3
    %vm8 = vcmask 31744
    %9 = vst.msk [vmem:[#allocation0] sm:$0xf] %vm8, %v7
    %s10 = scalar_lea.vmem %s0, 8
    %s11 = smov 3
    %v12 = vld [vmem:[%s10] ss:$16 sm:%s11]
    %s13 = scalar_lea.vmem %s0, 8
    %s14 = smov 12
    %v15 = vld [vmem:[%s13] ss:$16 sm:%s14]
    %vm16 = vcmask 1043458
    %v17 = vsel %vm16, %v15, %v12
    %18 = vrot.lane.b32.xlu0 %v17, 32
    %v19 = vpop.permute.xlu0 %18
    %vm20 = vcmask 294144
    %21 = vst.msk [vmem:[#allocation0] sm:$0xf] %vm20, %v19
    %s22 = scalar_lea.vmem %s0, 7
    %s23 = smov 3
    %v24 = vld [vmem:[%s22] ss:$16 sm:%s23]
    %s25 = scalar_lea.vmem %s0, 7
    %s26 = smov 12
    %v27 = vld [vmem:[%s25] ss:$16 sm:%s26]
    %vm28 = vcmask 1043458
    %v29 = vsel %vm28, %v27, %v24
    %30 = vrot.lane.b32.xlu0 %v29, 28
    %v31 = vpop.permute.xlu0 %30
    %vm32 = vcmask 261344
    %33 = vst.msk [vmem:[#allocation0] sm:$0xf] %vm32, %v31
    %s34 = scalar_lea.vmem %s0, 6
    %s35 = smov 3
    %v36 = vld [vmem:[%s34] ss:$16 sm:%s35]
    %s37 = scalar_lea.vmem %s0, 6
    %s38 = smov 12
    %v39 = vld [vmem:[%s37] ss:$16 sm:%s38]
    %vm40 = vcmask 1043458
    %v41 = vsel %vm40, %v39, %v36
    %42 = vrot.lane.b32.xlu0 %v41, 24
    %v43 = vpop.permute.xlu0 %42
    %vm44 = vcmask 228544
    %45 = vst.msk [vmem:[#allocation0] sm:$0xf] %vm44, %v43
    %s46 = scalar_lea.vmem %s0, 5
    %s47 = smov 3
    %v48 = vld [vmem:[%s46] ss:$16 sm:%s47]
    %s49 = scalar_lea.vmem %s0, 5
    %s50 = smov 12
    %v51 = vld [vmem:[%s49] ss:$16 sm:%s50]
    %vm52 = vcmask 1043458
    %v53 = vsel %vm52, %v51, %v48
    %54 = vrot.lane.b32.xlu0 %v53, 20
    %v55 = vpop.permute.xlu0 %54
    %vm56 = vcmask 195744
    %57 = vst.msk [vmem:[#allocation0] sm:$0xf] %vm56, %v55
    %s58 = scalar_lea.vmem %s0, 4
    %s59 = smov 3
    %v60 = vld [vmem:[%s58] ss:$16 sm:%s59]
    %s61 = scalar_lea.vmem %s0, 4
    %s62 = smov 12
    %v63 = vld [vmem:[%s61] ss:$16 sm:%s62]
    %vm64 = vcmask 1043458
    %v65 = vsel %vm64, %v63, %v60
    %66 = vrot.lane.b32.xlu0 %v65, 16
    %v67 = vpop.permute.xlu0 %66
    %vm68 = vcmask 162944
    %69 = vst.msk [vmem:[#allocation0] sm:$0xf] %vm68, %v67
    %s70 = scalar_lea.vmem %s0, 3
    %s71 = smov 3
    %v72 = vld [vmem:[%s70] ss:$16 sm:%s71]
    %s73 = scalar_lea.vmem %s0, 3
    %s74 = smov 12
    %v75 = vld [vmem:[%s73] ss:$16 sm:%s74]
    %vm76 = vcmask 1043458
    %v77 = vsel %vm76, %v75, %v72
    %78 = vrot.lane.b32.xlu0 %v77, 12
    %v79 = vpop.permute.xlu0 %78
    %vm80 = vcmask 130144
    %81 = vst.msk [vmem:[#allocation0] sm:$0xf] %vm80, %v79
    %s82 = scalar_lea.vmem %s0, 2
    %s83 = smov 3
    %v84 = vld [vmem:[%s82] ss:$16 sm:%s83]
    %s85 = scalar_lea.vmem %s0, 2
    %s86 = smov 12
    %v87 = vld [vmem:[%s85] ss:$16 sm:%s86]
    %vm88 = vcmask 1043458
    %v89 = vsel %vm88, %v87, %v84
    %90 = vrot.lane.b32.xlu0 %v89, 8
    %v91 = vpop.permute.xlu0 %90
    %vm92 = vcmask 97344
    %93 = vst.msk [vmem:[#allocation0] sm:$0xf] %vm92, %v91
    %s94 = scalar_lea.vmem %s0, 1
    %s95 = smov 3
    %v96 = vld [vmem:[%s94] ss:$16 sm:%s95]
    %s97 = scalar_lea.vmem %s0, 1
    %s98 = smov 12
    %v99 = vld [vmem:[%s97] ss:$16 sm:%s98]
    %vm100 = vcmask 1043458
    %v101 = vsel %vm100, %v99, %v96
    %102 = vrot.lane.b32.xlu0 %v101, 4
    %v103 = vpop.permute.xlu0 %102
    %vm104 = vcmask 64544
    %105 = vst.msk [vmem:[#allocation0] sm:$0xf] %vm104, %v103
    %s107 = sshllo.u32 0, 4
    %v109 = vld [vmem:[#allocation0] sm:%s107]
    %s110 = sshllo.u32 0, 4
    %111 = vst [vmem:[%s1] sm:%s110] %v109

// kernel: odconv2d.1
$region0: #{odconv2d.1}
  #allocation0 [shape = 'u32[]', space=smem, size = 0x4, offset = 0x4, fixed_abs, tag = 'smem constant byte address 0x4 - core index']
  #allocation1 [shape = 'u32[144,128]{1,0:T(1,128)}', space=vmem, size = 0x12000, scoped, tag = 'internal scratch']
  %s0 = inlined_call_operand.vmem [shape: f32[2,36,256], index: 0, kind: input, shape index: {}]
  %s1 = inlined_call_operand.vmem [shape: f32[16,4], index: 1, kind: input, shape index: {}]
  %s2 = inlined_call_operand.vmem [shape: f32[16,1], index: 2, kind: input, shape index: {}]
  %s3 = inlined_call_operand.vmem [shape: f32[16,1], index: 3, kind: input, shape index: {}]
  %s4 = inlined_call_operand.vmem [shape: f32[23,16], index: 4, kind: input, shape index: {}]
  %s5 = inlined_call_operand.vmem [shape: f32[23,1], index: 5, kind: input, shape index: {}]
  %s6 = inlined_call_operand.vmem [shape: f32[2,8,36], index: 6, kind: input, shape index: {}]
  %s7 = inlined_call_operand.vmem [shape: f32[36,9], index: 7, kind: input, shape index: {}]
  %s8 = inlined_call_operand.vmem [shape: f32[36,4], index: 8, kind: input, shape index: {}]
  %s9 = inlined_call_operand.vmem [shape: f32[2,8,256], index: 9, kind: output, shape index: {}]
  %s10 = sld [smem:[#allocation0]]
  $region46: #{odconv2d.1} parent=0
    _
  %s12 = ssub.s32 1, %s10
  %s13 = scalar_select 0, %s12, %s10
  // Predicated region
  $region2: #{odconv2d.1} parent=0 // pred_check
    _
  $region3: #{odconv2d.1} parent=0 // pred_check_branch
    %15 = sbr.rel (0) target = $region5
  $region4: #{odconv2d.1} parent=0 // pred_region
    _
  $region5: #{odconv2d.1} parent=0 // pred_fallthru
    _
  // Predicated region
  $region6: #{odconv2d.1} parent=0 // pred_check
    _
  $region7: #{odconv2d.1} parent=0 // pred_check_branch
    %17 = sbr.rel (0) target = $region9
  $region8: #{odconv2d.1} parent=0 // pred_region
    _
  $region9: #{odconv2d.1} parent=0 // pred_fallthru
    _
  // Predicated region
  $region10: #{odconv2d.1} parent=0 // pred_check
    _
  $region11: #{odconv2d.1} parent=0 // pred_check_branch
    %19 = sbr.rel (0) target = $region13
  $region12: #{odconv2d.1} parent=0 // pred_region
    _
  $region13: #{odconv2d.1} parent=0 // pred_fallthru
    _
  // Predicated region
  $region14: #{odconv2d.1} parent=0 // pred_check
    _
  $region15: #{odconv2d.1} parent=0 // pred_check_branch
    %21 = sbr.rel (0) target = $region17
  $region16: #{odconv2d.1} parent=0 // pred_region
    _
  $region17: #{odconv2d.1} parent=0 // pred_fallthru
    _
  // Predicated region
  $region18: #{odconv2d.1} parent=0 // pred_check
    _
  $region19: #{odconv2d.1} parent=0 // pred_check_branch
    %23 = sbr.rel (0) target = $region21
  $region20: #{odconv2d.1} parent=0 // pred_region
    _
  $region21: #{odconv2d.1} parent=0 // pred_fallthru
    _
  // Predicated region
  $region22: #{odconv2d.1} parent=0 // pred_check
    _
  $region23: #{odconv2d.1} parent=0 // pred_check_branch
    %25 = sbr.rel (0) target = $region25
  $region24: #{odconv2d.1} parent=0 // pred_region
    _
  $region25: #{odconv2d.1} parent=0 // pred_fallthru
    _
  // Predicated region
  $region26: #{odconv2d.1} parent=0 // pred_check
    _
  $region27: #{odconv2d.1} parent=0 // pred_check_branch
    %27 = sbr.rel (0) target = $region29
  $region28: #{odconv2d.1} parent=0 // pred_region
    _
  $region29: #{odconv2d.1} parent=0 // pred_fallthru
    _
  // Predicated region
  $region30: #{odconv2d.1} parent=0 // pred_check
    _
  $region31: #{odconv2d.1} parent=0 // pred_check_branch
    %29 = sbr.rel (0) target = $region33
  $region32: #{odconv2d.1} parent=0 // pred_region
    _
  $region33: #{odconv2d.1} parent=0 // pred_fallthru
    _
  // Predicated region
  $region34: #{odconv2d.1} parent=0 // pred_check
    _
  $region35: #{odconv2d.1} parent=0 // pred_check_branch
    %31 = sbr.rel (0) target = $region37
  $region36: #{odconv2d.1} parent=0 // pred_region
    _
  $region37: #{odconv2d.1} parent=0 // pred_fallthru
    _
  %v32 = vld [vmem:[%s0 + $0x20] sm:$0xf]
  %v33 = vld [vmem:[%s0 + $0x28] sm:$0xf]
  %vm34 = vcmask 1043456
  %v35 = vsel %vm34, %v32, 0.0
  %v36 = vsel %vm34, %v33, 0.0
  %v37 = vadd.f32 %v35, %v36
  %38 = vadd.xlane.f32.xlu0 %v37
  %v39 = vpop.xlane.xlu0 %38
  %v40 = vrcp.pop 256.0
  %v41 = vmul.f32 %v39, %v40
  %s42 = scalar_lea.vmem %s0, 80
  %v43 = vld [vmem:[%s42 + $0x20] sm:$0xf]
  %v44 = vld [vmem:[%s42 + $0x28] sm:$0xf]
  %v45 = vsel %vm34, %v43, 0.0
  %v46 = vsel %vm34, %v44, 0.0
  %v47 = vadd.f32 %v45, %v46
  %48 = vadd.xlane.f32.xlu0 %v47
  %v49 = vpop.xlane.xlu0 %48
  %v50 = vmul.f32 %v49, %v40
  %vm51 = vcmask 7168
  %v52 = vsel %vm51, %v41, %v50
  %v53 = vld [vmem:[%s1] sm:$0xff]
  %v54 = vld [vmem:[%s1 + $0x8] sm:$0xff]
  %vm55 = vcmask 31744
  %v57 = vsel %vm55, %v53, 0
  %v60 = vsel %vm55, %v54, 0
  %v63 = vsel %vm34, %v52, 0
  %65 = vmatprep.subr.mxu0 0.0
  %66 = vmatpush1.msra.mxu0 %v63
  %67 = vmatprep.subr.mxu0 0.0
  %68 = vmatpush1.msra.mxu0 0.0
  %69 = vmatprep.subr.mxu0 0.0
  %70 = vmatpush1.msra.mxu0 0.0
  %71 = vmatprep.subr.mxu0 0.0
  %72 = vmatpush1.msra.mxu0 0.0
  %73 = vmatprep.subr.mxu0 0.0
  %74 = vmatpush1.msra.mxu0 0.0
  %75 = vmatprep.subr.mxu0 0.0
  %76 = vmatpush1.msra.mxu0 0.0
  %77 = vmatprep.subr.mxu0 0.0
  %78 = vmatpush1.msra.mxu0 0.0
  %79 = vmatprep.subr.mxu0 0.0
  %80 = vmatpush1.msra.mxu0 0.0
  %81 = vmatprep.subr.mxu0 0.0
  %82 = vmatpush1.msra.mxu0 0.0
  %83 = vmatprep.subr.mxu0 0.0
  %84 = vmatpush1.msra.mxu0 0.0
  %85 = vmatprep.subr.mxu0 0.0
  %86 = vmatpush1.msra.mxu0 0.0
  %87 = vmatprep.subr.mxu0 0.0
  %88 = vmatpush1.msra.mxu0 0.0
  %89 = vmatprep.subr.mxu0 0.0
  %90 = vmatpush1.msra.mxu0 0.0
  %91 = vmatprep.subr.mxu0 0.0
  %92 = vmatpush1.msra.mxu0 0.0
  %93 = vmatprep.subr.mxu0 0.0
  %94 = vmatpush1.msra.mxu0 0.0
  %95 = vmatprep.subr.mxu0 0.0
  %96 = vmatpush1.msra.mxu0 0.0
  %97 = vmatprep.subr.mxu0 0.0
  %98 = vmatpush1.msra.mxu0 0.0
  %99 = vmatprep.subr.mxu0 0.0
  %100 = vmatpush1.msra.mxu0 0.0
  %101 = vmatprep.subr.mxu0 0.0
  %102 = vmatpush1.msra.mxu0 0.0
  %103 = vmatprep.subr.mxu0 0.0
  %104 = vmatpush1.msra.mxu0 0.0
  %105 = vmatprep.subr.mxu0 0.0
  %106 = vmatpush1.msra.mxu0 0.0
  %107 = vmatprep.subr.mxu0 0.0
  %108 = vmatpush1.msra.mxu0 0.0
  %109 = vmatprep.subr.mxu0 0.0
  %110 = vmatpush1.msra.mxu0 0.0
  %111 = vmatprep.subr.mxu0 0.0
  %112 = vmatpush1.msra.mxu0 0.0
  %113 = vmatprep.subr.mxu0 0.0
  %114 = vmatpush1.msra.mxu0 0.0
  %115 = vmatprep.subr.mxu0 0.0
  %116 = vmatpush1.msra.mxu0 0.0
  %117 = vmatprep.subr.mxu0 0.0
  %118 = vmatpush1.msra.mxu0 0.0
  %119 = vmatprep.subr.mxu0 0.0
  %120 = vmatpush1.msra.mxu0 0.0
  %121 = vmatprep.subr.mxu0 0.0
  %122 = vmatpush1.msra.mxu0 0.0
  %123 = vmatprep.subr.mxu0 0.0
  %124 = vmatpush1.msra.mxu0 0.0
  %125 = vmatprep.subr.mxu0 0.0
  %126 = vmatpush1.msra.mxu0 0.0
  %127 = vmatprep.subr.mxu0 0.0
  %128 = vmatpush1.msra.mxu0 0.0
  %129 = vmatprep.mubr.f32.mxu0 0.0
  %130 = vmatmul.mubr.f32.gmra.mrb[0].mxu0 %v57
  %v131 = vpop.f32.mrb[0].mxu0
  %v132 = vadd.f32 0.0, %v131
  %v133 = vpop.f32.mrb[0].mxu0
  %134 = vmatprep.mubr.f32.mxu0 0.0
  %135 = vmatmul.mubr.f32.gmra.mrb[0].mxu0 %v60
  %v136 = vpop.f32.mrb[0].mxu0
  %v137 = vadd.f32 0.0, %v136
  %v138 = vpop.f32.mrb[0].mxu0
  %139 = vdwg.mxu0
  %v140 = vld [vmem:[%s2] sm:$0xff]
  %v141 = vld [vmem:[%s2 + $0x8] sm:$0xff]
  %143 = vset.pattern.permute.xlu0 0
  %144 = vperm.xlu0 %143, %v140
  %v145 = vpop.permute.xlu0 %144
  %148 = vset.pattern.permute.xlu0 0
  %149 = vperm.xlu0 %148, %v141
  %v150 = vpop.permute.xlu0 %149
  %v152 = vmul.f32 %v132, %v145
  %v153 = vmul.f32 %v137, %v150
  %v154 = vld [vmem:[%s3] sm:$0xff]
  %v155 = vld [vmem:[%s3 + $0x8] sm:$0xff]
  %157 = vset.pattern.permute.xlu0 0
  %158 = vperm.xlu0 %157, %v154
  %v159 = vpop.permute.xlu0 %158
  %162 = vset.pattern.permute.xlu0 0
  %163 = vperm.xlu0 %162, %v155
  %v164 = vpop.permute.xlu0 %163
  %v166 = vadd.f32 %v152, %v159
  %v167 = vadd.f32 %v153, %v164
  %v168 = vmax.f32 %v166, 0.0
  %v169 = vmax.f32 %v167, 0.0
  %v170 = vld [vmem:[%s4] sm:$0xff]
  %v171 = vld [vmem:[%s4 + $0x8] sm:$0xff]
  %v172 = vld [vmem:[%s4 + $0x10] sm:$0x7f]
  %v173 = vld [vmem:[%s5] sm:$0xff]
  %v174 = vld [vmem:[%s5 + $0x8] sm:$0xff]
  %v175 = vld [vmem:[%s5 + $0x10] sm:$0x7f]
  %177 = vset.pattern.permute.xlu0 0
  %178 = vperm.xlu0 %177, %v173
  %v179 = vpop.permute.xlu0 %178
  %182 = vset.pattern.permute.xlu0 0
  %183 = vperm.xlu0 %182, %v174
  %v184 = vpop.permute.xlu0 %183
  %187 = vset.pattern.permute.xlu0 0
  %188 = vperm.xlu0 %187, %v175
  %v189 = vpop.permute.xlu0 %188
  %vm191 = vcmask 130048
  %v193 = vsel %vm191, %v170, 0
  %v196 = vsel %vm191, %v171, 0
  %v199 = vsel %vm191, %v172, 0
  %201 = vmatprep.subr.mxu0 0.0
  %202 = vmatpush1.msra.mxu0 %v168
  %203 = vmatprep.subr.mxu0 0.0
  %204 = vmatpush1.msra.mxu0 %v169
  %205 = vmatprep.subr.mxu0 0.0
  %206 = vmatpush1.msra.mxu0 0.0
  %207 = vmatprep.subr.mxu0 0.0
  %208 = vmatpush1.msra.mxu0 0.0
  %209 = vmatprep.subr.mxu0 0.0
  %210 = vmatpush1.msra.mxu0 0.0
  %211 = vmatprep.subr.mxu0 0.0
  %212 = vmatpush1.msra.mxu0 0.0
  %213 = vmatprep.subr.mxu0 0.0
  %214 = vmatpush1.msra.mxu0 0.0
  %215 = vmatprep.subr.mxu0 0.0
  %216 = vmatpush1.msra.mxu0 0.0
  %217 = vmatprep.subr.mxu0 0.0
  %218 = vmatpush1.msra.mxu0 0.0
  %219 = vmatprep.subr.mxu0 0.0
  %220 = vmatpush1.msra.mxu0 0.0
  %221 = vmatprep.subr.mxu0 0.0
  %222 = vmatpush1.msra.mxu0 0.0
  %223 = vmatprep.subr.mxu0 0.0
  %224 = vmatpush1.msra.mxu0 0.0
  %225 = vmatprep.subr.mxu0 0.0
  %226 = vmatpush1.msra.mxu0 0.0
  %227 = vmatprep.subr.mxu0 0.0
  %228 = vmatpush1.msra.mxu0 0.0
  %229 = vmatprep.subr.mxu0 0.0
  %230 = vmatpush1.msra.mxu0 0.0
  %231 = vmatprep.subr.mxu0 0.0
  %232 = vmatpush1.msra.mxu0 0.0
  %233 = vmatprep.subr.mxu0 0.0
  %234 = vmatpush1.msra.mxu0 0.0
  %235 = vmatprep.subr.mxu0 0.0
  %236 = vmatpush1.msra.mxu0 0.0
  %237 = vmatprep.subr.mxu0 0.0
  %238 = vmatpush1.msra.mxu0 0.0
  %239 = vmatprep.subr.mxu0 0.0
  %240 = vmatpush1.msra.mxu0 0.0
  %241 = vmatprep.subr.mxu0 0.0
  %242 = vmatpush1.msra.mxu0 0.0
  %243 = vmatprep.subr.mxu0 0.0
  %244 = vmatpush1.msra.mxu0 0.0
  %245 = vmatprep.subr.mxu0 0.0
  %246 = vmatpush1.msra.mxu0 0.0
  %247 = vmatprep.subr.mxu0 0.0
  %248 = vmatpush1.msra.mxu0 0.0
  %249 = vmatprep.subr.mxu0 0.0
  %250 = vmatpush1.msra.mxu0 0.0
  %251 = vmatprep.subr.mxu0 0.0
  %252 = vmatpush1.msra.mxu0 0.0
  %253 = vmatprep.subr.mxu0 0.0
  %254 = vmatpush1.msra.mxu0 0.0
  %255 = vmatprep.subr.mxu0 0.0
  %256 = vmatpush1.msra.mxu0 0.0
  %257 = vmatprep.subr.mxu0 0.0
  %258 = vmatpush1.msra.mxu0 0.0
  %259 = vmatprep.subr.mxu0 0.0
  %260 = vmatpush1.msra.mxu0 0.0
  %261 = vmatprep.subr.mxu0 0.0
  %262 = vmatpush1.msra.mxu0 0.0
  %263 = vmatprep.subr.mxu0 0.0
  %264 = vmatpush1.msra.mxu0 0.0
  %265 = vmatprep.mubr.f32.mxu0 0.0
  %266 = vmatmul.mubr.f32.gmra.mrb[0].mxu0 %v193
  %v267 = vpop.f32.mrb[0].mxu0
  %v268 = vadd.f32 %v179, %v267
  %v269 = vpop.f32.mrb[0].mxu0
  %270 = vmatprep.mubr.f32.mxu0 0.0
  %271 = vmatmul.mubr.f32.gmra.mrb[0].mxu0 %v196
  %v272 = vpop.f32.mrb[0].mxu0
  %v273 = vadd.f32 %v184, %v272
  %v274 = vpop.f32.mrb[0].mxu0
  %275 = vmatprep.mubr.f32.mxu0 0.0
  %276 = vmatmul.mubr.f32.gmra.mrb[0].mxu0 %v199
  %v277 = vpop.f32.mrb[0].mxu0
  %v278 = vadd.f32 %v189, %v277
  %v279 = vpop.f32.mrb[0].mxu0
  %280 = vdwg.mxu0
  %v281 = vsub.f32 0.0, %v268
  %v282 = vmul.f32 %v281, 1.442695
  %v283 = vpow.pop %v282
  %v284 = vadd.f32 %v283, 1.0
  %v285 = vrcp.pop %v284
  %v286 = vsub.f32 0.0, %v273
  %v287 = vmul.f32 %v286, 1.442695
  %v288 = vpow.pop %v287
  %v289 = vadd.f32 %v288, 1.0
  %v290 = vrcp.pop %v289
  %v291 = vsub.f32 0.0, %v278
  %v292 = vmul.f32 %v291, 1.442695
  %v293 = vpow.pop %v292
  %v294 = vadd.f32 %v293, 1.0
  %v295 = vrcp.pop %v294
  %vm296 = vcmask 14341
  %v297 = vsel %vm296, %v278, -inf
  %v298 = vrot.slane %v297, 4
  %v299 = vmax.f32 %v297, %v298
  %v300 = vrot.slane %v299, 2
  %v301 = vmax.f32 %v299, %v300
  %v302 = vrot.slane %v301, 1
  %v303 = vmax.f32 %v301, %v302
  %v304 = vsub.f32 %v278, %v303
  %v305 = vmul.f32 %v304, 1.442695
  %v306 = vpow.pop %v305
  %v308 = vrot.slane %v306, 5
  %vm310 = vcmask 9216
  %v311 = vsel %vm310, %v308, 0.0
  %v312 = vrot.slane %v311, 4
  %v313 = vadd.f32 %v311, %v312
  %v314 = vrot.slane %v313, 2
  %v315 = vadd.f32 %v313, %v314
  %v316 = vrot.slane %v315, 1
  %v317 = vadd.f32 %v315, %v316
  %v318 = vrcp.pop %v317
  %v319 = vmul.f32 %v306, %v318
  %v320 = vld [vmem:[%s7] sm:$0xff]
  %v321 = vld [vmem:[%s7 + $0x8] sm:$0xff]
  %v322 = vld [vmem:[%s7 + $0x10] sm:$0xff]
  %v323 = vld [vmem:[%s7 + $0x18] sm:$0xff]
  %v324 = vld [vmem:[%s7 + $0x20] sm:$0xf]
  %v327 = vrot.slane %v290, 4
  %v328 = vrot.slane %v295, 4
  %v329 = vsel %vm34, %v327, %v328
  %vm331 = vcmask 72704
  %v333 = vsel %vm331, %v320, 0
  %v336 = vsel %vm331, %v321, 0
  %v339 = vsel %vm331, %v322, 0
  %v342 = vsel %vm331, %v323, 0
  %v345 = vsel %vm331, %v324, 0
  %vm347 = vcmask 1040384
  %v348 = vsel %vm347, %v328, 0
  %350 = vmatprep.subr.mxu0 0.0
  %351 = vmatpush1.msra.mxu0 %v329
  %352 = vmatprep.subr.mxu0 0.0
  %353 = vmatpush1.msra.mxu0 %v348
  %354 = vmatprep.subr.mxu0 0.0
  %355 = vmatpush1.msra.mxu0 0.0
  %356 = vmatprep.subr.mxu0 0.0
  %357 = vmatpush1.msra.mxu0 0.0
  %358 = vmatprep.subr.mxu0 0.0
  %359 = vmatpush1.msra.mxu0 0.0
  %360 = vmatprep.subr.mxu0 0.0
  %361 = vmatpush1.msra.mxu0 0.0
  %362 = vmatprep.subr.mxu0 0.0
  %363 = vmatpush1.msra.mxu0 0.0
  %364 = vmatprep.subr.mxu0 0.0
  %365 = vmatpush1.msra.mxu0 0.0
  %366 = vmatprep.subr.mxu0 0.0
  %367 = vmatpush1.msra.mxu0 0.0
  %368 = vmatprep.subr.mxu0 0.0
  %369 = vmatpush1.msra.mxu0 0.0
  %370 = vmatprep.subr.mxu0 0.0
  %371 = vmatpush1.msra.mxu0 0.0
  %372 = vmatprep.subr.mxu0 0.0
  %373 = vmatpush1.msra.mxu0 0.0
  %374 = vmatprep.subr.mxu0 0.0
  %375 = vmatpush1.msra.mxu0 0.0
  %376 = vmatprep.subr.mxu0 0.0
  %377 = vmatpush1.msra.mxu0 0.0
  %378 = vmatprep.subr.mxu0 0.0
  %379 = vmatpush1.msra.mxu0 0.0
  %380 = vmatprep.subr.mxu0 0.0
  %381 = vmatpush1.msra.mxu0 0.0
  %382 = vmatprep.subr.mxu0 0.0
  %383 = vmatpush1.msra.mxu0 0.0
  %384 = vmatprep.subr.mxu0 0.0
  %385 = vmatpush1.msra.mxu0 0.0
  %386 = vmatprep.subr.mxu0 0.0
  %387 = vmatpush1.msra.mxu0 0.0
  %388 = vmatprep.subr.mxu0 0.0
  %389 = vmatpush1.msra.mxu0 0.0
  %390 = vmatprep.subr.mxu0 0.0
  %391 = vmatpush1.msra.mxu0 0.0
  %392 = vmatprep.subr.mxu0 0.0
  %393 = vmatpush1.msra.mxu0 0.0
  %394 = vmatprep.subr.mxu0 0.0
  %395 = vmatpush1.msra.mxu0 0.0
  %396 = vmatprep.subr.mxu0 0.0
  %397 = vmatpush1.msra.mxu0 0.0
  %398 = vmatprep.subr.mxu0 0.0
  %399 = vmatpush1.msra.mxu0 0.0
  %400 = vmatprep.subr.mxu0 0.0
  %401 = vmatpush1.msra.mxu0 0.0
  %402 = vmatprep.subr.mxu0 0.0
  %403 = vmatpush1.msra.mxu0 0.0
  %404 = vmatprep.subr.mxu0 0.0
  %405 = vmatpush1.msra.mxu0 0.0
  %406 = vmatprep.subr.mxu0 0.0
  %407 = vmatpush1.msra.mxu0 0.0
  %408 = vmatprep.subr.mxu0 0.0
  %409 = vmatpush1.msra.mxu0 0.0
  %410 = vmatprep.subr.mxu0 0.0
  %411 = vmatpush1.msra.mxu0 0.0
  %412 = vmatprep.subr.mxu0 0.0
  %413 = vmatpush1.msra.mxu0 0.0
  %414 = vmatprep.mubr.f32.mxu0 0.0
  %415 = vmatmul.mubr.f32.gmra.mrb[0].mxu0 %v333
  %v416 = vpop.f32.mrb[0].mxu0
  %v417 = vadd.f32 0.0, %v416
  %v418 = vpop.f32.mrb[0].mxu0
  %419 = vmatprep.mubr.f32.mxu0 0.0
  %420 = vmatmul.mubr.f32.gmra.mrb[0].mxu0 %v336
  %v421 = vpop.f32.mrb[0].mxu0
  %v422 = vadd.f32 0.0, %v421
  %v423 = vpop.f32.mrb[0].mxu0
  %424 = vmatprep.mubr.f32.mxu0 0.0
  %425 = vmatmul.mubr.f32.gmra.mrb[0].mxu0 %v339
  %v426 = vpop.f32.mrb[0].mxu0
  %v427 = vadd.f32 0.0, %v426
  %v428 = vpop.f32.mrb[0].mxu0
  %429 = vmatprep.mubr.f32.mxu0 0.0
  %430 = vmatmul.mubr.f32.gmra.mrb[0].mxu0 %v342
  %v431 = vpop.f32.mrb[0].mxu0
  %v432 = vadd.f32 0.0, %v431
  %v433 = vpop.f32.mrb[0].mxu0
  %434 = vmatprep.mubr.f32.mxu0 0.0
  %435 = vmatmul.mubr.f32.gmra.mrb[0].mxu0 %v345
  %v436 = vpop.f32.mrb[0].mxu0
  %v437 = vadd.f32 0.0, %v436
  %v438 = vpop.f32.mrb[0].mxu0
  %439 = vdwg.mxu0
  %v440 = vld [vmem:[%s8] sm:$0xff]
  %v441 = vld [vmem:[%s8 + $0x8] sm:$0xff]
  %v442 = vld [vmem:[%s8 + $0x10] sm:$0xff]
  %v443 = vld [vmem:[%s8 + $0x18] sm:$0xff]
  %v444 = vld [vmem:[%s8 + $0x20] sm:$0xf]
  %v446 = vsel %vm55, %v440, 0
  %v449 = vsel %vm55, %v441, 0
  %v452 = vsel %vm55, %v442, 0
  %v455 = vsel %vm55, %v443, 0
  %v458 = vsel %vm55, %v444, 0
  %v461 = vsel %vm34, %v285, 0
  %463 = vmatprep.subr.mxu0 0.0
  %464 = vmatpush1.msra.mxu0 %v461
  %465 = vmatprep.subr.mxu0 0.0
  %466 = vmatpush1.msra.mxu0 0.0
  %467 = vmatprep.subr.mxu0 0.0
  %468 = vmatpush1.msra.mxu0 0.0
  %469 = vmatprep.subr.mxu0 0.0
  %470 = vmatpush1.msra.mxu0 0.0
  %471 = vmatprep.subr.mxu0 0.0
  %472 = vmatpush1.msra.mxu0 0.0
  %473 = vmatprep.subr.mxu0 0.0
  %474 = vmatpush1.msra.mxu0 0.0
  %475 = vmatprep.subr.mxu0 0.0
  %476 = vmatpush1.msra.mxu0 0.0
  %477 = vmatprep.subr.mxu0 0.0
  %478 = vmatpush1.msra.mxu0 0.0
  %479 = vmatprep.subr.mxu0 0.0
  %480 = vmatpush1.msra.mxu0 0.0
  %481 = vmatprep.subr.mxu0 0.0
  %482 = vmatpush1.msra.mxu0 0.0
  %483 = vmatprep.subr.mxu0 0.0
  %484 = vmatpush1.msra.mxu0 0.0
  %485 = vmatprep.subr.mxu0 0.0
  %486 = vmatpush1.msra.mxu0 0.0
  %487 = vmatprep.subr.mxu0 0.0
  %488 = vmatpush1.msra.mxu0 0.0
  %489 = vmatprep.subr.mxu0 0.0
  %490 = vmatpush1.msra.mxu0 0.0
  %491 = vmatprep.subr.mxu0 0.0
  %492 = vmatpush1.msra.mxu0 0.0
  %493 = vmatprep.subr.mxu0 0.0
  %494 = vmatpush1.msra.mxu0 0.0
  %495 = vmatprep.subr.mxu0 0.0
  %496 = vmatpush1.msra.mxu0 0.0
  %497 = vmatprep.subr.mxu0 0.0
  %498 = vmatpush1.msra.mxu0 0.0
  %499 = vmatprep.subr.mxu0 0.0
  %500 = vmatpush1.msra.mxu0 0.0
  %501 = vmatprep.subr.mxu0 0.0
  %502 = vmatpush1.msra.mxu0 0.0
  %503 = vmatprep.subr.mxu0 0.0
  %504 = vmatpush1.msra.mxu0 0.0
  %505 = vmatprep.subr.mxu0 0.0
  %506 = vmatpush1.msra.mxu0 0.0
  %507 = vmatprep.subr.mxu0 0.0
  %508 = vmatpush1.msra.mxu0 0.0
  %509 = vmatprep.subr.mxu0 0.0
  %510 = vmatpush1.msra.mxu0 0.0
  %511 = vmatprep.subr.mxu0 0.0
  %512 = vmatpush1.msra.mxu0 0.0
  %513 = vmatprep.subr.mxu0 0.0
  %514 = vmatpush1.msra.mxu0 0.0
  %515 = vmatprep.subr.mxu0 0.0
  %516 = vmatpush1.msra.mxu0 0.0
  %517 = vmatprep.subr.mxu0 0.0
  %518 = vmatpush1.msra.mxu0 0.0
  %519 = vmatprep.subr.mxu0 0.0
  %520 = vmatpush1.msra.mxu0 0.0
  %521 = vmatprep.subr.mxu0 0.0
  %522 = vmatpush1.msra.mxu0 0.0
  %523 = vmatprep.subr.mxu0 0.0
  %524 = vmatpush1.msra.mxu0 0.0
  %525 = vmatprep.subr.mxu0 0.0
  %526 = vmatpush1.msra.mxu0 0.0
  %527 = vmatprep.mubr.f32.mxu0 0.0
  %528 = vmatmul.mubr.f32.gmra.mrb[0].mxu0 %v446
  %v529 = vpop.f32.mrb[0].mxu0
  %v530 = vadd.f32 0.0, %v529
  %v531 = vpop.f32.mrb[0].mxu0
  %532 = vmatprep.mubr.f32.mxu0 0.0
  %533 = vmatmul.mubr.f32.gmra.mrb[0].mxu0 %v449
  %v534 = vpop.f32.mrb[0].mxu0
  %v535 = vadd.f32 0.0, %v534
  %v536 = vpop.f32.mrb[0].mxu0
  %537 = vmatprep.mubr.f32.mxu0 0.0
  %538 = vmatmul.mubr.f32.gmra.mrb[0].mxu0 %v452
  %v539 = vpop.f32.mrb[0].mxu0
  %v540 = vadd.f32 0.0, %v539
  %v541 = vpop.f32.mrb[0].mxu0
  %542 = vmatprep.mubr.f32.mxu0 0.0
  %543 = vmatmul.mubr.f32.gmra.mrb[0].mxu0 %v455
  %v544 = vpop.f32.mrb[0].mxu0
  %v545 = vadd.f32 0.0, %v544
  %v546 = vpop.f32.mrb[0].mxu0
  %547 = vmatprep.mubr.f32.mxu0 0.0
  %548 = vmatmul.mubr.f32.gmra.mrb[0].mxu0 %v458
  %v549 = vpop.f32.mrb[0].mxu0
  %v550 = vadd.f32 0.0, %v549
  %v551 = vpop.f32.mrb[0].mxu0
  %552 = vdwg.mxu0
  %v553 = vmul.f32 %v417, %v530
  %v554 = vmul.f32 %v422, %v535
  %v555 = vmul.f32 %v427, %v540
  %v556 = vmul.f32 %v432, %v545
  %v557 = vmul.f32 %v437, %v550
  %v558 = vld [vmem:[%s6] sm:$0xff]
  %v559 = vld [vmem:[%s6 + $0x8] sm:$0xff]
  %v561 = vrot.slane %v319, 5
  %s562 = vtos %v561
  %v563 = vstv %s562
  %v565 = vmul.f32 %v563, %v558
  %v566 = vrot.slane %v319, 6
  %s567 = vtos %v566
  %v568 = vstv %s567
  %v570 = vmul.f32 %v568, %v559
  %v571 = vadd.f32 %v565, %v570
  %572 = vset.pattern.permute.xlu0 0
  %573 = vperm.xlu0 %572, %v285
  %v574 = vpop.permute.xlu0 %573
  %575 = vset.pattern.permute.xlu0 0
  %576 = vperm.xlu0 %575, %v290
  %v577 = vpop.permute.xlu0 %576
  %v578 = vrot.slane %v574, 4
  %v579 = vrot.slane %v577, 4
  %v580 = vsel %vm34, %v578, %v579
  %v582 = vmul.f32 %v571, %v580
  %v583 = vld [vmem:[%s0] sm:$0xff]
  %v584 = vld [vmem:[%s0 + $0x8] sm:$0xff]
  %v585 = vld [vmem:[%s0 + $0x10] sm:$0xff]
  %v586 = vld [vmem:[%s0 + $0x18] sm:$0xff]
  %v587 = vld [vmem:[%s0 + $0x20] sm:$0xff]
  %v588 = vld [vmem:[%s0 + $0x28] sm:$0xff]
  %v589 = vld [vmem:[%s0 + $0x30] sm:$0xff]
  %v590 = vld [vmem:[%s0 + $0x38] sm:$0xff]
  %v591 = vld [vmem:[%s0 + $0x40] sm:$0xf]
  %v592 = vld [vmem:[%s0 + $0x48] sm:$0xf]
  %594 = vset.pattern.permute.xlu0 0
  %595 = vperm.xlu0 %594, %v553
  %v596 = vpop.permute.xlu0 %595
  %599 = vset.pattern.permute.xlu0 0
  %600 = vperm.xlu0 %599, %v554
  %v601 = vpop.permute.xlu0 %600
  %604 = vset.pattern.permute.xlu0 0
  %605 = vperm.xlu0 %604, %v555
  %v606 = vpop.permute.xlu0 %605
  %609 = vset.pattern.permute.xlu0 0
  %610 = vperm.xlu0 %609, %v556
  %v611 = vpop.permute.xlu0 %610
  %614 = vset.pattern.permute.xlu0 0
  %615 = vperm.xlu0 %614, %v557
  %v616 = vpop.permute.xlu0 %615
  %v618 = vmul.f32 %v583, %v596
  %v619 = vmul.f32 %v584, %v596
  %v620 = vmul.f32 %v585, %v601
  %v621 = vmul.f32 %v586, %v601
  %v622 = vmul.f32 %v587, %v606
  %v623 = vmul.f32 %v588, %v606
  %v624 = vmul.f32 %v589, %v611
  %v625 = vmul.f32 %v590, %v611
  %v626 = vmul.f32 %v591, %v616
  %v627 = vmul.f32 %v592, %v616
  %vm628 = vcmask 293888
  %v630 = vsel %vm628, %v582, 0
  %v633 = vsel %vm34, %v626, 0
  %v636 = vsel %vm34, %v627, 0
  %638 = vmatprep.subr.mxu0 %v619
  %639 = vmatpush1.msra.mxu0 %v618
  %640 = vmatprep.subr.mxu0 %v621
  %641 = vmatpush1.msra.mxu0 %v620
  %642 = vmatprep.subr.mxu0 %v623
  %643 = vmatpush1.msra.mxu0 %v622
  %644 = vmatprep.subr.mxu0 %v625
  %645 = vmatpush1.msra.mxu0 %v624
  %646 = vmatprep.subr.mxu0 %v636
  %647 = vmatpush1.msra.mxu0 %v633
  %648 = vmatprep.subr.mxu0 0.0
  %649 = vmatpush1.msra.mxu0 0.0
  %650 = vmatprep.subr.mxu0 0.0
  %651 = vmatpush1.msra.mxu0 0.0
  %652 = vmatprep.subr.mxu0 0.0
  %653 = vmatpush1.msra.mxu0 0.0
  %654 = vmatprep.subr.mxu0 0.0
  %655 = vmatpush1.msra.mxu0 0.0
  %656 = vmatprep.subr.mxu0 0.0
  %657 = vmatpush1.msra.mxu0 0.0
  %658 = vmatprep.subr.mxu0 0.0
  %659 = vmatpush1.msra.mxu0 0.0
  %660 = vmatprep.subr.mxu0 0.0
  %661 = vmatpush1.msra.mxu0 0.0
  %662 = vmatprep.subr.mxu0 0.0
  %663 = vmatpush1.msra.mxu0 0.0
  %664 = vmatprep.subr.mxu0 0.0
  %665 = vmatpush1.msra.mxu0 0.0
  %666 = vmatprep.subr.mxu0 0.0
  %667 = vmatpush1.msra.mxu0 0.0
  %668 = vmatprep.subr.mxu0 0.0
  %669 = vmatpush1.msra.mxu0 0.0
  %670 = vmatprep.subr.mxu0 0.0
  %671 = vmatpush1.msra.mxu0 0.0
  %672 = vmatprep.subr.mxu0 0.0
  %673 = vmatpush1.msra.mxu0 0.0
  %674 = vmatprep.subr.mxu0 0.0
  %675 = vmatpush1.msra.mxu0 0.0
  %676 = vmatprep.subr.mxu0 0.0
  %677 = vmatpush1.msra.mxu0 0.0
  %678 = vmatprep.subr.mxu0 0.0
  %679 = vmatpush1.msra.mxu0 0.0
  %680 = vmatprep.subr.mxu0 0.0
  %681 = vmatpush1.msra.mxu0 0.0
  %682 = vmatprep.subr.mxu0 0.0
  %683 = vmatpush1.msra.mxu0 0.0
  %684 = vmatprep.subr.mxu0 0.0
  %685 = vmatpush1.msra.mxu0 0.0
  %686 = vmatprep.subr.mxu0 0.0
  %687 = vmatpush1.msra.mxu0 0.0
  %688 = vmatprep.subr.mxu0 0.0
  %689 = vmatpush1.msra.mxu0 0.0
  %690 = vmatprep.subr.mxu0 0.0
  %691 = vmatpush1.msra.mxu0 0.0
  %692 = vmatprep.subr.mxu0 0.0
  %693 = vmatpush1.msra.mxu0 0.0
  %694 = vmatprep.subr.mxu0 0.0
  %695 = vmatpush1.msra.mxu0 0.0
  %696 = vmatprep.subr.mxu0 0.0
  %697 = vmatpush1.msra.mxu0 0.0
  %698 = vmatprep.subr.mxu0 0.0
  %699 = vmatpush1.msra.mxu0 0.0
  %700 = vmatprep.subr.mxu0 0.0
  %701 = vmatpush1.msra.mxu0 0.0
  %702 = vmatprep.mubr.f32.mxu0 0.0
  %703 = vmatmul.mubr.f32.gmra.mrb[0].mxu0 %v630
  %v704 = vpop.f32.mrb[0].mxu0
  %v705 = vadd.f32 0.0, %v704
  %v706 = vpop.f32.mrb[0].mxu0
  %v707 = vadd.f32 0.0, %v706
  %708 = vdwg.mxu0
  %709 = vst [vmem:[%s9] sm:$0xff] %v705
  %710 = vst [vmem:[%s9 + $0x8] sm:$0xff] %v707
  %711 = vrot.lane.b32.xlu0 %v561, 127
  %v712 = vpop.permute.xlu0 %711
  %s713 = vtos %v712
  %v714 = vstv %s713
  %v716 = vmul.f32 %v714, %v558
  %717 = vrot.lane.b32.xlu0 %v566, 127
  %v718 = vpop.permute.xlu0 %717
  %s719 = vtos %v718
  %v720 = vstv %s719
  %v722 = vmul.f32 %v720, %v559
  %v723 = vadd.f32 %v716, %v722
  %724 = vset.pattern.permute.xlu0 1
  %725 = vperm.xlu0 %724, %v285
  %v726 = vpop.permute.xlu0 %725
  %727 = vset.pattern.permute.xlu0 1
  %728 = vperm.xlu0 %727, %v290
  %v729 = vpop.permute.xlu0 %728
  %v730 = vrot.slane %v726, 4
  %v731 = vrot.slane %v729, 4
  %v732 = vsel %vm34, %v730, %v731
  %v734 = vmul.f32 %v723, %v732
  %v735 = vld [vmem:[%s42] sm:$0xff]
  %v736 = vld [vmem:[%s42 + $0x8] sm:$0xff]
  %v737 = vld [vmem:[%s42 + $0x10] sm:$0xff]
  %v738 = vld [vmem:[%s42 + $0x18] sm:$0xff]
  %v739 = vld [vmem:[%s42 + $0x20] sm:$0xff]
  %v740 = vld [vmem:[%s42 + $0x28] sm:$0xff]
  %v741 = vld [vmem:[%s42 + $0x30] sm:$0xff]
  %v742 = vld [vmem:[%s42 + $0x38] sm:$0xff]
  %v743 = vld [vmem:[%s42 + $0x40] sm:$0xf]
  %v744 = vld [vmem:[%s42 + $0x48] sm:$0xf]
  %745 = vset.pattern.permute.xlu0 1
  %746 = vperm.xlu0 %745, %v553
  %v747 = vpop.permute.xlu0 %746
  %749 = vset.pattern.permute.xlu0 1
  %750 = vperm.xlu0 %749, %v554
  %v751 = vpop.permute.xlu0 %750
  %753 = vset.pattern.permute.xlu0 1
  %754 = vperm.xlu0 %753, %v555
  %v755 = vpop.permute.xlu0 %754
  %757 = vset.pattern.permute.xlu0 1
  %758 = vperm.xlu0 %757, %v556
  %v759 = vpop.permute.xlu0 %758
  %761 = vset.pattern.permute.xlu0 1
  %762 = vperm.xlu0 %761, %v557
  %v763 = vpop.permute.xlu0 %762
  %v765 = vmul.f32 %v735, %v747
  %v766 = vmul.f32 %v736, %v747
  %v767 = vmul.f32 %v737, %v751
  %v768 = vmul.f32 %v738, %v751
  %v769 = vmul.f32 %v739, %v755
  %v770 = vmul.f32 %v740, %v755
  %v771 = vmul.f32 %v741, %v759
  %v772 = vmul.f32 %v742, %v759
  %v773 = vmul.f32 %v743, %v763
  %v774 = vmul.f32 %v744, %v763
  %v776 = vsel %vm628, %v734, 0
  %v779 = vsel %vm34, %v773, 0
  %v782 = vsel %vm34, %v774, 0
  %784 = vmatprep.subr.mxu0 %v766
  %785 = vmatpush1.msra.mxu0 %v765
  %786 = vmatprep.subr.mxu0 %v768
  %787 = vmatpush1.msra.mxu0 %v767
  %788 = vmatprep.subr.mxu0 %v770
  %789 = vmatpush1.msra.mxu0 %v769
  %790 = vmatprep.subr.mxu0 %v772
  %791 = vmatpush1.msra.mxu0 %v771
  %792 = vmatprep.subr.mxu0 %v782
  %793 = vmatpush1.msra.mxu0 %v779
  %794 = vmatprep.subr.mxu0 0.0
  %795 = vmatpush1.msra.mxu0 0.0
  %796 = vmatprep.subr.mxu0 0.0
  %797 = vmatpush1.msra.mxu0 0.0
  %798 = vmatprep.subr.mxu0 0.0
  %799 = vmatpush1.msra.mxu0 0.0
  %800 = vmatprep.subr.mxu0 0.0
  %801 = vmatpush1.msra.mxu0 0.0
  %802 = vmatprep.subr.mxu0 0.0
  %803 = vmatpush1.msra.mxu0 0.0
  %804 = vmatprep.subr.mxu0 0.0
  %805 = vmatpush1.msra.mxu0 0.0
  %806 = vmatprep.subr.mxu0 0.0
  %807 = vmatpush1.msra.mxu0 0.0
  %808 = vmatprep.subr.mxu0 0.0
  %809 = vmatpush1.msra.mxu0 0.0
  %810 = vmatprep.subr.mxu0 0.0
  %811 = vmatpush1.msra.mxu0 0.0
  %812 = vmatprep.subr.mxu0 0.0
  %813 = vmatpush1.msra.mxu0 0.0
  %814 = vmatprep.subr.mxu0 0.0
  %815 = vmatpush1.msra.mxu0 0.0
  %816 = vmatprep.subr.mxu0 0.0
  %817 = vmatpush1.msra.mxu0 0.0
  %818 = vmatprep.subr.mxu0 0.0
  %819 = vmatpush1.msra.mxu0 0.0
  %820 = vmatprep.subr.mxu0 0.0
  %821 = vmatpush1.msra.mxu0 0.0
  %822 = vmatprep.subr.mxu0 0.0
  %823 = vmatpush1.msra.mxu0 0.0
  %824 = vmatprep.subr.mxu0 0.0
  %825 = vmatpush1.msra.mxu0 0.0
  %826 = vmatprep.subr.mxu0 0.0
  %827 = vmatpush1.msra.mxu0 0.0
  %828 = vmatprep.subr.mxu0 0.0
  %829 = vmatpush1.msra.mxu0 0.0
  %830 = vmatprep.subr.mxu0 0.0
  %831 = vmatpush1.msra.mxu0 0.0
  %832 = vmatprep.subr.mxu0 0.0
  %833 = vmatpush1.msra.mxu0 0.0
  %834 = vmatprep.subr.mxu0 0.0
  %835 = vmatpush1.msra.mxu0 0.0
  %836 = vmatprep.subr.mxu0 0.0
  %837 = vmatpush1.msra.mxu0 0.0
  %838 = vmatprep.subr.mxu0 0.0
  %839 = vmatpush1.msra.mxu0 0.0
  %840 = vmatprep.subr.mxu0 0.0
  %841 = vmatpush1.msra.mxu0 0.0
  %842 = vmatprep.subr.mxu0 0.0
  %843 = vmatpush1.msra.mxu0 0.0
  %844 = vmatprep.subr.mxu0 0.0
  %845 = vmatpush1.msra.mxu0 0.0
  %846 = vmatprep.subr.mxu0 0.0
  %847 = vmatpush1.msra.mxu0 0.0
  %848 = vmatprep.mubr.f32.mxu0 0.0
  %849 = vmatmul.mubr.f32.gmra.mrb[0].mxu0 %v776
  %v850 = vpop.f32.mrb[0].mxu0
  %v851 = vadd.f32 0.0, %v850
  %v852 = vpop.f32.mrb[0].mxu0
  %v853 = vadd.f32 0.0, %v852
  %854 = vdwg.mxu0
  %s855 = scalar_lea.vmem %s9, 16
  %856 = vst [vmem:[%s855] sm:$0xff] %v851
  %857 = vst [vmem:[%s855 + $0x8] sm:$0xff] %v853
  // Predicated region
  $region38: #{odconv2d.1} parent=0 // pred_check
    _
  $region39: #{odconv2d.1} parent=0 // pred_check_branch
    %859 = sbr.rel (0) target = $region41
  $region40: #{odconv2d.1} parent=0 // pred_region
    _
  $region41: #{odconv2d.1} parent=0 // pred_fallthru
    _
  // Predicated region
  $region42: #{odconv2d.1} parent=0 // pred_check
    _
  $region43: #{odconv2d.1} parent=0 // pred_check_branch
    %861 = sbr.rel (0) target = $region45
  $region44: #{odconv2d.1} parent=0 // pred_region
    _
  $region45: #{odconv2d.1} parent=0 // pred_fallthru
    _

</llo_original>
